<compile_context>
chip_gen: v6e
topology: v6e:2x2x1
jax: 0.10.0
libtpu: 0.0.40
codegen_flags: <defaults>
</compile_context>

<pallas_src>
import functools
from collections import Counter

import numpy as np
import jax
import jax.numpy as jnp
from jax.experimental import pallas as pl
from jax.experimental.pallas import tpu as pltpu


def _eoe_kernel(x_ref, w1_ref, b1_ref, w2_ref, b2_ref, cls_ref, infm_ref,
                out_ref, *, num_experts, task_slots, class_per_task, query_size):
    """One batch-tile of the fused EoE expert-scoring forward.

    x_ref    : [TB, 2H]   bf16   [pooled_no_marker | pooled_marker]
    w1_ref   : [2H, E*Q]  bf16   block-structured adapter weights (all experts)
    b1_ref   : [1, E*Q]   f32    adapter biases
    w2_ref   : [E*Q, W]   bf16   block-diagonal [-2*means^T | clfW] (all experts)
    b2_ref   : [1, W]     f32    [||means||^2 | clfb]
    cls_ref  : [1, W]     f32    per-lane global class index  (lane % (T*C))
    infm_ref : [1, W]     f32    1.0 where torch sets scores[:, :e_id] = +inf
    out_ref  : [TB, P]    f32    packed: [scores | class idx | logits | 0-pad]
    """
    E, T, C, Q = num_experts, task_slots, class_per_task, query_size
    TC = T * C
    ETC = E * TC
    ELC = E * C
    TB = out_ref.shape[0]
    outw = w2_ref.shape[1]
    out_pad = out_ref.shape[1]

    # (1) ONE MXU call for every expert's adapter head (fuses E matmuls).
    h = jnp.tanh(jnp.dot(x_ref[...], w1_ref[...],
                         preferred_element_type=jnp.float32) + b1_ref[...])  # [TB, E*Q] f32

    # (2) ONE block-diagonal MXU call: prototype terms (-2 h.m + ||m||^2) and
    #     every expert classifier for all experts at once.
    fused = jnp.dot(h.astype(w2_ref.dtype), w2_ref[...],
                    preferred_element_type=jnp.float32) + b2_ref[...]        # [TB, outw] f32

    # (3) ||h_e||^2 per expert; added only AFTER the per-task min (hoisted off
    #     the wide intermediate -> argmin runs on raw fused lanes).
    hsq = h * h
    hh_parts = [
        jnp.broadcast_to(
            jnp.sum(hsq[:, e * Q:(e + 1) * Q], axis=-1, keepdims=True), (TB, TC))
        for e in range(E)
    ]
    if outw > ETC:
        hh_parts.append(jnp.zeros((TB, outw - ETC), jnp.float32))
    hh = jnp.concatenate(hh_parts, axis=-1)                                   # [TB, outw]

    # (4) Full-width segment min / first-argmin over each task's C class lanes.
    #     Lane j accumulates candidates j .. j+C-1; only segment-start lanes
    #     (j = e*TC + t*C) are read back, so wrap-around is harmless.
    cls = jnp.broadcast_to(cls_ref[...], fused.shape)
    minv, minc = fused, cls
    for d in range(1, C):                 # C is tiny & static -> full unroll
        v_s = jnp.concatenate([fused[:, d:], fused[:, :d]], axis=-1)   # fused[:, j+d]
        c_s = jnp.concatenate([cls[:, d:], cls[:, :d]], axis=-1)
        take = v_s < minv                 # strict '<' keeps the FIRST argmin (torch .min)
        minc = jnp.where(take, c_s, minc)
        minv = jnp.minimum(minv, v_s)

    # (5) score = sqrt(max(min dist^2, 0));  scores[:, :e_id] = +inf (torch).
    score = jnp.sqrt(jnp.maximum(minv + hh, 0.0))
    score = jnp.where(infm_ref[...] > 0.5, jnp.inf, score)

    # (6) Lane-dense packed output slab (single unmasked full-width store per row).
    parts = [score[:, :ETC], minc[:, :ETC], fused[:, ETC:ETC + ELC]]
    pad_w = out_pad - (2 * ETC + ELC)
    if pad_w > 0:
        parts.append(jnp.zeros((TB, pad_w), jnp.float32))
    out_ref[...] = jnp.concatenate(parts, axis=-1)


def eoe_expert_scores(pooled_nomark, pooled_marker, adW, adb, means, clfW, clfb,
                      *, class_per_task):
    """Runs all E experts of the EoE eval branch in one fused Pallas kernel.

    Returns (score, cls_idx, logits) with shapes [B, E, T], [B, E, T], [B, E, C];
    expert index 0 is e_id == -1 (the frozen "bert" expert).
    """
    E, H, Q = adW.shape
    E2, TC, Qm = means.shape
    assert Qm == Q and E2 == E
    C = class_per_task
    T = TC // C
    B = pooled_marker.shape[0]
    ETC, ELC = E * TC, E * C

    TB = 8                                              # sublane multiple (pad B)
    Bp = ((B + TB - 1) // TB) * TB
    outw = max(128, -(-(ETC + ELC) // 128) * 128)       # fused matmul width
    out_pad = max(128, -(-(2 * ETC + ELC) // 128) * 128)  # packed output width
    f32 = jnp.float32

    # --- one block-structured adapter RHS (fuses all E adapter matmuls) --------
    W1 = jnp.zeros((2 * H, E * Q), f32)
    W1 = W1.at[:H, :Q].set(adW[0])                      # e_id == -1 <- no-marker pooling
    for e in range(1, E):
        W1 = W1.at[H:, e * Q:(e + 1) * Q].set(adW[e])   # e_id >= 0  <- marker pooling
    b1 = adb.reshape(1, E * Q)

    # --- one block-diagonal prototype + classifier RHS -------------------------
    W2 = jnp.zeros((E * Q, outw), f32)
    b2 = jnp.zeros((1, outw), f32)
    for e in range(E):
        W2 = W2.at[e * Q:(e + 1) * Q, e * TC:(e + 1) * TC].set(-2.0 * means[e].T)
        W2 = W2.at[e * Q:(e + 1) * Q, ETC + e * C:ETC + (e + 1) * C].set(clfW[e])
        b2 = b2.at[0, e * TC:(e + 1) * TC].set(jnp.sum(means[e] * means[e], axis=-1))
        b2 = b2.at[0, ETC + e * C:ETC + (e + 1) * C].set(clfb[e, 0])

    # --- per-lane constants (class-index payload & torch's scores[:, :e_id]=inf)
    lane = np.arange(outw)
    cls_payload = (lane % TC).astype(np.float32)[None, :]
    e_lane, t_lane = lane // TC, (lane % TC) // C
    inf_mask = ((t_lane < e_lane - 1) & (lane < ETC)).astype(np.float32)[None, :]

    x_cat = jnp.concatenate([pooled_nomark, pooled_marker], axis=-1)   # [B, 2H]
    x_cat = jnp.pad(x_cat, ((0, Bp - B), (0, 0)))

    kernel = functools.partial(_eoe_kernel, num_experts=E, task_slots=T,
                               class_per_task=C, query_size=Q)

    # Weights stay VMEM-resident (tiny at this config). At realistic H / many
    # experts, stream per-expert over an extra grid axis instead (review item).
    vmem_bytes = int(2 * (W1.size * 2 + W2.size * 2
                          + (b1.size + b2.size + 2 * outw) * 4
                          + TB * 2 * H * 2 + TB * out_pad * 4) + (4 << 20))

    packed = pl.pallas_call(
        kernel,
        out_shape=jax.ShapeDtypeStruct((Bp, out_pad), f32),   # f32: margins feed routing
        grid=(Bp // TB,),
        in_specs=[
            pl.BlockSpec((TB, 2 * H), lambda i: (i, 0)),
            pl.BlockSpec((2 * H, E * Q), lambda i: (0, 0)),
            pl.BlockSpec((1, E * Q), lambda i: (0, 0)),
            pl.BlockSpec((E * Q, outw), lambda i: (0, 0)),
            pl.BlockSpec((1, outw), lambda i: (0, 0)),
            pl.BlockSpec((1, outw), lambda i: (0, 0)),
            pl.BlockSpec((1, outw), lambda i: (0, 0)),
        ],
        out_specs=pl.BlockSpec((TB, out_pad), lambda i: (i, 0)),
        compiler_params=pltpu.CompilerParams(
            dimension_semantics=("parallel",),   # shard batch tiles across v7x TCs
            vmem_limit_bytes=vmem_bytes),
    )(x_cat.astype(jnp.bfloat16),
      W1.astype(jnp.bfloat16),
      b1,
      W2.astype(jnp.bfloat16),
      b2,
      jnp.asarray(cls_payload),
      jnp.asarray(inf_mask))

    packed = packed[:B]                                              # drop pad rows
    score = packed[:, :ETC].reshape(B, E, T, C)[..., 0]              # [B, E, T]
    cls_idx = packed[:, ETC:2 * ETC].reshape(B, E, T, C)[..., 0].astype(jnp.int32)
    logits = packed[:, 2 * ETC:2 * ETC + ELC].reshape(B, E, C)       # [B, E, C]
    return score, cls_idx, logits


if __name__ == "__main__":
    # ------- synthetic config (eval / inference branch of EoE.forward) -------
    B, S = 4, 8                 # batch, sequence length
    H = 128                     # bert hidden size
    Q = H                       # query_size (task_name != 'RelationExtraction')
    C = 4                       # class_per_task
    num_tasks = 2
    T = num_tasks + 1           # task slots per expert distribution
    E = num_tasks + 2           # experts e_id in [-1 .. num_tasks]
    vocab = 32
    default_expert = "bert"
    max_expert = float("inf")   # config.max_expert == -1

    key = jax.random.PRNGKey(0)
    keys = jax.random.split(key, 10)

    input_ids = jax.random.randint(keys[0], (B, S), 1, vocab)
    pad = jax.random.bernoulli(keys[1], 0.2, (B, S))
    input_ids = jnp.where(pad, 0, input_ids)                          # 0 == padding
    input_ids_without_marker = jax.random.randint(keys[2], (B, S), 1, vocab)

    # TODO(synk): PeftFeatureExtractor (full BERT + PEFT adapters, file-based label
    # descriptions) has no compact Pallas equivalent; stood in by an embedding
    # mean-pool (host glue) + per-expert tanh adapter head (fused in-kernel matmul).
    emb = 0.1 * jax.random.normal(keys[3], (vocab, H), jnp.float32)

    def pool(ids):
        mask = (ids != 0).astype(jnp.float32)                         # attention_mask
        e = jnp.take(emb, ids, axis=0)                                # [B, S, H]
        return (e * mask[..., None]).sum(1) / jnp.maximum(mask.sum(1, keepdims=True), 1.0)

    pooled_marker = pool(input_ids)
    pooled_nomark = pool(input_ids_without_marker)

    # deterministic synthetic parameters (per-expert adapter, prototypes, classifiers)
    adW = 0.05 * jax.random.normal(keys[4], (E, H, Q), jnp.float32)
    adb = 0.05 * jax.random.normal(keys[5], (E, 1, Q), jnp.float32)
    means = 0.5 * jax.random.normal(keys[6], (E, T * C, Q), jnp.float32)
    clfW = 0.05 * jax.random.normal(keys[7], (E, Q, C), jnp.float32)   # slot 0 dropped below
    clfb = 0.05 * jax.random.normal(keys[8], (E, 1, C), jnp.float32)

    score, cls_idx, logits = jax.block_until_ready(
        eoe_expert_scores(pooled_nomark, pooled_marker, adW, adb, means, clfW, clfb,
                          class_per_task=C))

    # --------- numerical sanity check vs a pure numpy f32 reference (loose: bf16) ---------
    np_pm, np_pn = np.asarray(pooled_marker), np.asarray(pooled_nomark)
    np_adW, np_adb = np.asarray(adW), np.asarray(adb)
    np_means, np_clfW, np_clfb = np.asarray(means), np.asarray(clfW), np.asarray(clfb)
    got_scores = np.asarray(score)          # [B, E, T]
    got_cls = np.asarray(cls_idx)           # [B, E, T]  global (class + task*C) like torch
    got_logits = np.asarray(logits)         # [B, E, C]

    for e in range(E):
        p = np_pn if e == 0 else np_pm
        h = np.tanh(p @ np_adW[e] + np_adb[e])
        d = np.sqrt(((h[:, None, :] - np_means[e][None]) ** 2).sum(-1)).reshape(B, T, C)
        ref_min = d.min(-1)                                           # [B, T]
        ref_score = ref_min.copy()
        if e - 1 >= 1:
            ref_score[:, :e - 1] = np.inf
        ref_logits = h @ np_clfW[e] + np_clfb[e, 0]

        finite = np.isfinite(ref_score)
        assert np.array_equal(finite, np.isfinite(got_scores[:, e]))
        assert np.max(np.abs(got_scores[:, e][finite] - ref_score[finite])) < 0.05
        assert np.max(np.abs(got_logits[:, e] - ref_logits)) < 0.02
        # class indices: global = local + task*C (matches torch get_prompt_indices)
        assert np.array_equal(got_cls[:, e] // C, np.broadcast_to(np.arange(T), (B, T)))
        chosen = np.take_along_axis(d, (got_cls[:, e] % C)[..., None], axis=-1)[..., 0]
        assert np.all(chosen <= ref_min + 0.05)        # picked class is (near-)closest

    # ---------------- routing glue: mirrors EoE.forward eval branch ----------------
    all_score_over_task = got_scores                    # [B, E, T]
    all_score_over_class = got_cls                      # [B, E, T]
    all_logits = got_logits[:, 1:]                      # [B, num_tasks+1, C] (drop e_id == -1)

    # torch.topk(..., largest=False) over all T -> ascending argsort
    expert_indices = np.argsort(all_score_over_task, axis=-1, kind="stable")

    bert_first = expert_indices[:, 0, 0]
    task_first = expert_indices[:, 1, 0]
    default_first = bert_first if default_expert == "bert" else task_first
    min_task = np.minimum(bert_first, task_first)
    need_vote = (bert_first != task_first) & (min_task + 1 > 1)
    indices = default_first.astype(np.int64).copy()
    for i in np.nonzero(need_vote)[0]:                  # rare per-row expert vote
        cur_min_expert = int(min_task[i]) + 1           # shift_expert_id
        cur_ans = []
        for j in range(0, cur_min_expert + 1):
            if j <= max_expert:
                for k in expert_indices[i][j]:
                    if k >= min_task[i]:
                        cur_ans.append(int(k))
                        break
        cur_count = Counter(cur_ans)
        most_common = cur_count.most_common(1)
        if most_common[0][1] == cur_ans.count(int(default_first[i])):
            indices[i] = int(default_first[i])
        else:
            indices[i] = most_common[0][0]

    sel_logits = all_logits[np.arange(B), indices]      # [B, C]
    preds = sel_logits.argmax(-1) + C * indices

    # sanity checks on shapes implied by the PyTorch forward
    assert preds.shape == (B,)
    assert all_score_over_task.shape == (B, E, T)
    assert all_score_over_class.shape == (B, E, T)
    assert all_logits.shape == (B, num_tasks + 1, C)
    assert np.isfinite(sel_logits).all()

    print("KERNEL_OK")
</pallas_src>

<mosaic_0001>
module attributes {stable_mosaic.version = 11 : i64} {
  func.func @_eoe_kernel(%arg0: i32, %arg1: memref<8x256xbf16, #tpu.memory_space<vmem>>, %arg2: memref<256x512xbf16, #tpu.memory_space<vmem>>, %arg3: memref<1x512xf32, #tpu.memory_space<vmem>>, %arg4: memref<512x128xbf16, #tpu.memory_space<vmem>>, %arg5: memref<1x128xf32, #tpu.memory_space<vmem>>, %arg6: memref<1x128xf32, #tpu.memory_space<vmem>>, %arg7: memref<1x128xf32, #tpu.memory_space<vmem>>, %arg8: memref<8x128xf32, #tpu.memory_space<vmem>>) attributes {dimension_semantics = [#tpu.dimension_semantics<parallel>], iteration_bounds = array<i64: 1>, scalar_prefetch = 0 : i64, scratch_operands = 0 : i64, tpu.core_type = #tpu.core_type<tc>, window_params = [{transform_indices = @transform_0, window_bounds = array<i64: 8, 256>}, {pipeline_mode = #tpu.pipeline_mode<synchronous>, transform_indices = @transform_1, window_bounds = array<i64: 256, 512>}, {pipeline_mode = #tpu.pipeline_mode<synchronous>, transform_indices = @transform_2, window_bounds = array<i64: 1, 512>}, {pipeline_mode = #tpu.pipeline_mode<synchronous>, transform_indices = @transform_3, window_bounds = array<i64: 512, 128>}, {pipeline_mode = #tpu.pipeline_mode<synchronous>, transform_indices = @transform_4, window_bounds = array<i64: 1, 128>}, {pipeline_mode = #tpu.pipeline_mode<synchronous>, transform_indices = @transform_5, window_bounds = array<i64: 1, 128>}, {pipeline_mode = #tpu.pipeline_mode<synchronous>, transform_indices = @transform_6, window_bounds = array<i64: 1, 128>}, {transform_indices = @transform_7, window_bounds = array<i64: 8, 128>}]} {
    %c0 = arith.constant 0 : index
    %c0_0 = arith.constant 0 : index
    %0 = vector.load %arg1[%c0, %c0_0] : memref<8x256xbf16, #tpu.memory_space<vmem>>, vector<8x256xbf16>
    %c0_1 = arith.constant 0 : index
    %c0_2 = arith.constant 0 : index
    %1 = vector.load %arg2[%c0_1, %c0_2] : memref<256x512xbf16, #tpu.memory_space<vmem>>, vector<256x512xbf16>
    %cst = arith.constant dense<0.000000e+00> : vector<8x512xf32>
    %2 = tpu.matmul %0, %1, %cst {dimension_numbers = #tpu.dot_dimension_numbers<[1], [0], [0], [1], [0, 0, 1, 1], [], []>} : vector<8x256xbf16>, vector<256x512xbf16>, vector<8x512xf32> -> vector<8x512xf32>
    %c0_3 = arith.constant 0 : index
    %c0_4 = arith.constant 0 : index
    %3 = vector.load %arg3[%c0_3, %c0_4] : memref<1x512xf32, #tpu.memory_space<vmem>>, vector<1x512xf32>
    %4 = vector.broadcast %3 : vector<1x512xf32> to vector<8x512xf32>
    %5 = arith.addf %2, %4 : vector<8x512xf32>
    %6 = math.tanh %5 : vector<8x512xf32>
    %7 = arith.truncf %6 : vector<8x512xf32> to vector<8x512xbf16>
    %c0_5 = arith.constant 0 : index
    %c0_6 = arith.constant 0 : index
    %8 = vector.load %arg4[%c0_5, %c0_6] : memref<512x128xbf16, #tpu.memory_space<vmem>>, vector<512x128xbf16>
    %cst_7 = arith.constant dense<0.000000e+00> : vector<8x128xf32>
    %9 = tpu.matmul %7, %8, %cst_7 {dimension_numbers = #tpu.dot_dimension_numbers<[1], [0], [0], [1], [0, 0, 1, 1], [], []>} : vector<8x512xbf16>, vector<512x128xbf16>, vector<8x128xf32> -> vector<8x128xf32>
    %c0_8 = arith.constant 0 : index
    %c0_9 = arith.constant 0 : index
    %10 = vector.load %arg5[%c0_8, %c0_9] : memref<1x128xf32, #tpu.memory_space<vmem>>, vector<1x128xf32>
    %11 = vector.broadcast %10 : vector<1x128xf32> to vector<8x128xf32>
    %12 = arith.addf %9, %11 : vector<8x128xf32>
    %13 = arith.mulf %6, %6 : vector<8x512xf32>
    %14 = vector.extract_strided_slice %13 {offsets = [0, 0], sizes = [8, 128], strides = [1, 1]} : vector<8x512xf32> to vector<8x128xf32>
    %cst_10 = arith.constant dense<0.000000e+00> : vector<8xf32>
    %15 = vector.multi_reduction <add>, %14, %cst_10 [1] : vector<8x128xf32> to vector<8xf32>
    %16 = vector.shape_cast %15 : vector<8xf32> to vector<8x1xf32>
    %17 = vector.shape_cast %16 : vector<8x1xf32> to vector<8x1xf32>
    %18 = vector.broadcast %17 : vector<8x1xf32> to vector<8x12xf32>
    %19 = vector.extract_strided_slice %13 {offsets = [0, 128], sizes = [8, 128], strides = [1, 1]} : vector<8x512xf32> to vector<8x128xf32>
    %cst_11 = arith.constant dense<0.000000e+00> : vector<8xf32>
    %20 = vector.multi_reduction <add>, %19, %cst_11 [1] : vector<8x128xf32> to vector<8xf32>
    %21 = vector.shape_cast %20 : vector<8xf32> to vector<8x1xf32>
    %22 = vector.shape_cast %21 : vector<8x1xf32> to vector<8x1xf32>
    %23 = vector.broadcast %22 : vector<8x1xf32> to vector<8x12xf32>
    %24 = vector.extract_strided_slice %13 {offsets = [0, 256], sizes = [8, 128], strides = [1, 1]} : vector<8x512xf32> to vector<8x128xf32>
    %cst_12 = arith.constant dense<0.000000e+00> : vector<8xf32>
    %25 = vector.multi_reduction <add>, %24, %cst_12 [1] : vector<8x128xf32> to vector<8xf32>
    %26 = vector.shape_cast %25 : vector<8xf32> to vector<8x1xf32>
    %27 = vector.shape_cast %26 : vector<8x1xf32> to vector<8x1xf32>
    %28 = vector.broadcast %27 : vector<8x1xf32> to vector<8x12xf32>
    %29 = vector.extract_strided_slice %13 {offsets = [0, 384], sizes = [8, 128], strides = [1, 1]} : vector<8x512xf32> to vector<8x128xf32>
    %cst_13 = arith.constant dense<0.000000e+00> : vector<8xf32>
    %30 = vector.multi_reduction <add>, %29, %cst_13 [1] : vector<8x128xf32> to vector<8xf32>
    %31 = vector.shape_cast %30 : vector<8xf32> to vector<8x1xf32>
    %32 = vector.shape_cast %31 : vector<8x1xf32> to vector<8x1xf32>
    %33 = vector.broadcast %32 : vector<8x1xf32> to vector<8x12xf32>
    %cst_14 = arith.constant 0.000000e+00 : f32
    %34 = vector.broadcast %cst_14 : f32 to vector<8x80xf32>
    %35 = tpu.concatenate %18, %23, %28, %33, %34 in 1 : vector<8x12xf32>, vector<8x12xf32>, vector<8x12xf32>, vector<8x12xf32>, vector<8x80xf32> -> vector<8x128xf32>
    %c0_15 = arith.constant 0 : index
    %c0_16 = arith.constant 0 : index
    %36 = vector.load %arg6[%c0_15, %c0_16] : memref<1x128xf32, #tpu.memory_space<vmem>>, vector<1x128xf32>
    %37 = vector.shape_cast %36 : vector<1x128xf32> to vector<1x128xf32>
    %38 = vector.broadcast %37 : vector<1x128xf32> to vector<8x128xf32>
    %39 = vector.extract_strided_slice %12 {offsets = [0, 1], sizes = [8, 127], strides = [1, 1]} : vector<8x128xf32> to vector<8x127xf32>
    %40 = vector.extract_strided_slice %12 {offsets = [0, 0], sizes = [8, 1], strides = [1, 1]} : vector<8x128xf32> to vector<8x1xf32>
    %41 = tpu.concatenate %39, %40 in 1 : vector<8x127xf32>, vector<8x1xf32> -> vector<8x128xf32>
    %42 = vector.extract_strided_slice %38 {offsets = [0, 1], sizes = [8, 127], strides = [1, 1]} : vector<8x128xf32> to vector<8x127xf32>
    %43 = vector.extract_strided_slice %38 {offsets = [0, 0], sizes = [8, 1], strides = [1, 1]} : vector<8x128xf32> to vector<8x1xf32>
    %44 = tpu.concatenate %42, %43 in 1 : vector<8x127xf32>, vector<8x1xf32> -> vector<8x128xf32>
    %45 = arith.cmpf olt, %41, %12 : vector<8x128xf32>
    %46 = arith.select %45, %44, %38 : vector<8x128xi1>, vector<8x128xf32>
    %47 = arith.minimumf %12, %41 : vector<8x128xf32>
    %48 = vector.extract_strided_slice %12 {offsets = [0, 2], sizes = [8, 126], strides = [1, 1]} : vector<8x128xf32> to vector<8x126xf32>
    %49 = vector.extract_strided_slice %12 {offsets = [0, 0], sizes = [8, 2], strides = [1, 1]} : vector<8x128xf32> to vector<8x2xf32>
    %50 = tpu.concatenate %48, %49 in 1 : vector<8x126xf32>, vector<8x2xf32> -> vector<8x128xf32>
    %51 = vector.extract_strided_slice %38 {offsets = [0, 2], sizes = [8, 126], strides = [1, 1]} : vector<8x128xf32> to vector<8x126xf32>
    %52 = vector.extract_strided_slice %38 {offsets = [0, 0], sizes = [8, 2], strides = [1, 1]} : vector<8x128xf32> to vector<8x2xf32>
    %53 = tpu.concatenate %51, %52 in 1 : vector<8x126xf32>, vector<8x2xf32> -> vector<8x128xf32>
    %54 = arith.cmpf olt, %50, %47 : vector<8x128xf32>
    %55 = arith.select %54, %53, %46 : vector<8x128xi1>, vector<8x128xf32>
    %56 = arith.minimumf %47, %50 : vector<8x128xf32>
    %57 = vector.extract_strided_slice %12 {offsets = [0, 3], sizes = [8, 125], strides = [1, 1]} : vector<8x128xf32> to vector<8x125xf32>
    %58 = vector.extract_strided_slice %12 {offsets = [0, 0], sizes = [8, 3], strides = [1, 1]} : vector<8x128xf32> to vector<8x3xf32>
    %59 = tpu.concatenate %57, %58 in 1 : vector<8x125xf32>, vector<8x3xf32> -> vector<8x128xf32>
    %60 = vector.extract_strided_slice %38 {offsets = [0, 3], sizes = [8, 125], strides = [1, 1]} : vector<8x128xf32> to vector<8x125xf32>
    %61 = vector.extract_strided_slice %38 {offsets = [0, 0], sizes = [8, 3], strides = [1, 1]} : vector<8x128xf32> to vector<8x3xf32>
    %62 = tpu.concatenate %60, %61 in 1 : vector<8x125xf32>, vector<8x3xf32> -> vector<8x128xf32>
    %63 = arith.cmpf olt, %59, %56 : vector<8x128xf32>
    %64 = arith.select %63, %62, %55 : vector<8x128xi1>, vector<8x128xf32>
    %65 = arith.minimumf %56, %59 : vector<8x128xf32>
    %66 = arith.addf %65, %35 : vector<8x128xf32>
    %cst_17 = arith.constant 0.000000e+00 : f32
    %67 = vector.broadcast %cst_17 : f32 to vector<8x128xf32>
    %68 = arith.maximumf %66, %67 : vector<8x128xf32>
    %69 = math.sqrt %68 : vector<8x128xf32>
    %c0_18 = arith.constant 0 : index
    %c0_19 = arith.constant 0 : index
    %70 = vector.load %arg7[%c0_18, %c0_19] : memref<1x128xf32, #tpu.memory_space<vmem>>, vector<1x128xf32>
    %cst_20 = arith.constant 5.000000e-01 : f32
    %71 = vector.broadcast %cst_20 : f32 to vector<1x128xf32>
    %72 = arith.cmpf ogt, %70, %71 : vector<1x128xf32>
    %cst_21 = arith.constant 0x7F800000 : f32
    %73 = vector.shape_cast %72 : vector<1x128xi1> to vector<1x128xi1>
    %74 = vector.broadcast %73 : vector<1x128xi1> to vector<8x128xi1>
    %75 = vector.broadcast %cst_21 : f32 to vector<8x128xf32>
    %76 = arith.select %74, %75, %69 : vector<8x128xi1>, vector<8x128xf32>
    %77 = vector.extract_strided_slice %76 {offsets = [0, 0], sizes = [8, 48], strides = [1, 1]} : vector<8x128xf32> to vector<8x48xf32>
    %78 = vector.extract_strided_slice %64 {offsets = [0, 0], sizes = [8, 48], strides = [1, 1]} : vector<8x128xf32> to vector<8x48xf32>
    %79 = vector.extract_strided_slice %12 {offsets = [0, 48], sizes = [8, 16], strides = [1, 1]} : vector<8x128xf32> to vector<8x16xf32>
    %cst_22 = arith.constant 0.000000e+00 : f32
    %80 = vector.broadcast %cst_22 : f32 to vector<8x16xf32>
    %81 = tpu.concatenate %77, %78, %79, %80 in 1 : vector<8x48xf32>, vector<8x48xf32>, vector<8x16xf32>, vector<8x16xf32> -> vector<8x128xf32>
    %c0_23 = arith.constant 0 : index
    %c0_24 = arith.constant 0 : index
    %82 = vector.load %arg8[%c0_23, %c0_24] : memref<8x128xf32, #tpu.memory_space<vmem>>, vector<8x128xf32>
    tpu.vector_store %arg8[%c0_23, %c0_24], %81 {strides = array<i32>} : memref<8x128xf32, #tpu.memory_space<vmem>>, vector<8x128xf32>,
    return
  }
  func.func @transform_0(%arg0: i32) -> (i32, i32) {
    %c0_i32 = arith.constant 0 : i32
    %c0_i32_0 = arith.constant 0 : i32
    return %arg0, %c0_i32 : i32, i32
  }
  func.func @transform_1(%arg0: i32) -> (i32, i32) {
    %c0_i32 = arith.constant 0 : i32
    %c0_i32_0 = arith.constant 0 : i32
    %c0_i32_1 = arith.constant 0 : i32
    return %c0_i32, %c0_i32_0 : i32, i32
  }
  func.func @transform_2(%arg0: i32) -> (i32, i32) {
    %c0_i32 = arith.constant 0 : i32
    %c0_i32_0 = arith.constant 0 : i32
    %c0_i32_1 = arith.constant 0 : i32
    return %c0_i32, %c0_i32_0 : i32, i32
  }
  func.func @transform_3(%arg0: i32) -> (i32, i32) {
    %c0_i32 = arith.constant 0 : i32
    %c0_i32_0 = arith.constant 0 : i32
    %c0_i32_1 = arith.constant 0 : i32
    return %c0_i32, %c0_i32_0 : i32, i32
  }
  func.func @transform_4(%arg0: i32) -> (i32, i32) {
    %c0_i32 = arith.constant 0 : i32
    %c0_i32_0 = arith.constant 0 : i32
    %c0_i32_1 = arith.constant 0 : i32
    return %c0_i32, %c0_i32_0 : i32, i32
  }
  func.func @transform_5(%arg0: i32) -> (i32, i32) {
    %c0_i32 = arith.constant 0 : i32
    %c0_i32_0 = arith.constant 0 : i32
    %c0_i32_1 = arith.constant 0 : i32
    return %c0_i32, %c0_i32_0 : i32, i32
  }
  func.func @transform_6(%arg0: i32) -> (i32, i32) {
    %c0_i32 = arith.constant 0 : i32
    %c0_i32_0 = arith.constant 0 : i32
    %c0_i32_1 = arith.constant 0 : i32
    return %c0_i32, %c0_i32_0 : i32, i32
  }
  func.func @transform_7(%arg0: i32) -> (i32, i32) {
    %c0_i32 = arith.constant 0 : i32
    %c0_i32_0 = arith.constant 0 : i32
    return %arg0, %c0_i32 : i32, i32
  }
}

</mosaic_0001>

<llo_original>
// kernel: tpu_custom_call.1
$region0: #{tpu_custom_call.1}
  #allocation0 [shape = 'u32[]', space=smem, size = 0x4, offset = 0x4, fixed_abs, tag = 'smem constant byte address 0x4 - core index']
  #allocation1 [shape = 'u32[144,128]{1,0:T(1,128)}', space=vmem, size = 0x12000, scoped, tag = 'internal scratch']
  %s0 = inlined_call_operand.hbm [shape: bf16[8,256], index: 0, kind: input, shape index: {}]
  %s1 = inlined_call_operand.hbm [shape: bf16[256,512], index: 1, kind: input, shape index: {}]
  %s2 = inlined_call_operand.hbm [shape: f32[1,512], index: 2, kind: input, shape index: {}]
  %s3 = inlined_call_operand.hbm [shape: bf16[512,128], index: 3, kind: input, shape index: {}]
  %s4 = inlined_call_operand.vmem [shape: f32[1,128], index: 4, kind: input, shape index: {}]
  %s5 = inlined_call_operand.vmem [shape: f32[1,128], index: 5, kind: input, shape index: {}]
  %s6 = inlined_call_operand.vmem [shape: f32[1,128], index: 6, kind: input, shape index: {}]
  %s7 = inlined_call_operand.hbm [shape: f32[8,128], index: 7, kind: output, shape index: {}]
  %s8 = sld [smem:[#allocation0]]
  $region54: #{tpu_custom_call.1} parent=0
    _
  %s10 = ssub.s32 1, %s8
  %s11 = scalar_select 0, %s10, %s8
  $region1: #{tpu_custom_call.1} parent=0
    #allocation2 [shape = 'u8[4096]{0}', space=vmem, size = 0x1000, scoped, tag = 'input window, operand 0, single buffered']
    #allocation3 [shape = 's32[1]{0}', space=sflag, size = 0x4, scoped, tag = 'scoped memory for tpu_custom_call.1']
    #allocation4 [shape = 's32[1]{0}', space=sflag, size = 0x4, scoped, tag = 'scoped memory for tpu_custom_call.1']
    #allocation5 [shape = 'u8[262144]{0}', space=vmem, size = 0x40000, scoped, tag = 'input window, operand 1, single buffered']
    #allocation6 [shape = 's32[1]{0}', space=sflag, size = 0x4, scoped, tag = 'scoped memory for tpu_custom_call.1']
    #allocation7 [shape = 'u8[2048]{0}', space=vmem, size = 0x800, scoped, tag = 'input window, operand 2, single buffered']
    #allocation8 [shape = 'u8[131072]{0}', space=vmem, size = 0x20000, scoped, tag = 'input window, operand 3, single buffered']
    #allocation9 [shape = 's32[1]{0}', space=sflag, size = 0x4, scoped, tag = 'scoped memory for tpu_custom_call.1']
    #allocation10 [shape = 'u8[4096]{0}', space=vmem, size = 0x1000, scoped, tag = 'output window, operand 0, single buffered']
    %12 = vsyncpa [#allocation3], 0
    %13 = vsyncpa [#allocation6], 0
    %14 = vsyncpa [#allocation9], 0
    %15 = vsyncpa [#allocation4], 0
    // Predicated region
    $region2: #{tpu_custom_call.1} parent=1 // pred_check
      _
    $region3: #{tpu_custom_call.1} parent=1 // pred_check_branch
      %17 = sbr.rel (0) target = $region5
    $region4: #{tpu_custom_call.1} parent=1 // pred_region
      %s19 = ssub.s32 128, 128
      %20 = vsyncadd [#allocation3], %s19
      %s22 = sshll.u32 [#allocation2], 4
      %s23 = int_to_ptr.vmem [resolvable:$true] %s22
      %25 = dma.hbm_to_vmem [thread:$0]  %s0, 128, %s23, [#allocation3]
    $region5: #{tpu_custom_call.1} parent=1 // pred_fallthru
      _
    // Predicated region
    $region6: #{tpu_custom_call.1} parent=1 // pred_check
      _
    $region7: #{tpu_custom_call.1} parent=1 // pred_check_branch
      %27 = sbr.rel (0) target = $region9
    $region8: #{tpu_custom_call.1} parent=1 // pred_region
      %s29 = ssub.s32 8192, 8192
      %30 = vsyncadd [#allocation6], %s29
      %s31 = sshll.u32 [#allocation5], 4
      %s32 = int_to_ptr.vmem [resolvable:$true] %s31
      %37 = dma.hbm_to_vmem [thread:$0]  %s1, 8192, %s32, [#allocation6], 256, 256, 16
    $region9: #{tpu_custom_call.1} parent=1 // pred_fallthru
      _
    // Predicated region
    $region10: #{tpu_custom_call.1} parent=1 // pred_check
      _
    $region11: #{tpu_custom_call.1} parent=1 // pred_check_branch
      %39 = sbr.rel (0) target = $region13
    $region12: #{tpu_custom_call.1} parent=1 // pred_region
      %s41 = ssub.s32 64, 64
      %42 = vsyncadd [#allocation6], %s41
      %s44 = sshll.u32 [#allocation7], 4
      %s45 = int_to_ptr.vmem [resolvable:$true] %s44
      %47 = dma.hbm_to_vmem [thread:$0]  %s2, 64, %s45, [#allocation6]
    $region13: #{tpu_custom_call.1} parent=1 // pred_fallthru
      _
    // Predicated region
    $region14: #{tpu_custom_call.1} parent=1 // pred_check
      _
    $region15: #{tpu_custom_call.1} parent=1 // pred_check_branch
      %49 = sbr.rel (0) target = $region17
    $region16: #{tpu_custom_call.1} parent=1 // pred_region
      %s51 = ssub.s32 4096, 4096
      %52 = vsyncadd [#allocation9], %s51
      %s53 = sshll.u32 [#allocation8], 4
      %s54 = int_to_ptr.vmem [resolvable:$true] %s53
      %59 = dma.hbm_to_vmem [thread:$0]  %s3, 4096, %s54, [#allocation9], 64, 64, 4
    $region17: #{tpu_custom_call.1} parent=1 // pred_fallthru
      _
    // Predicated region
    $region18: #{tpu_custom_call.1} parent=1 // pred_check
      _
    $region19: #{tpu_custom_call.1} parent=1 // pred_check_branch
      %61 = sbr.rel (0) target = $region21
    $region20: #{tpu_custom_call.1} parent=1 // pred_region
      _
    $region21: #{tpu_custom_call.1} parent=1 // pred_fallthru
      _
    // Predicated region
    $region22: #{tpu_custom_call.1} parent=1 // pred_check
      _
    $region23: #{tpu_custom_call.1} parent=1 // pred_check_branch
      %63 = sbr.rel (0) target = $region25
    $region24: #{tpu_custom_call.1} parent=1 // pred_region
      _
    $region25: #{tpu_custom_call.1} parent=1 // pred_fallthru
      _
    // Predicated region
    $region26: #{tpu_custom_call.1} parent=1 // pred_check
      _
    $region27: #{tpu_custom_call.1} parent=1 // pred_check_branch
      %65 = sbr.rel (0) target = $region29
    $region28: #{tpu_custom_call.1} parent=1 // pred_region
      _
    $region29: #{tpu_custom_call.1} parent=1 // pred_fallthru
      _
    // Predicated region
    $region30: #{tpu_custom_call.1} parent=1 // pred_check
      _
    $region31: #{tpu_custom_call.1} parent=1 // pred_check_branch
      %67 = sbr.rel (0) target = $region33
    $region32: #{tpu_custom_call.1} parent=1 // pred_region
      %68 = dma.done [#allocation3], 128
    $region33: #{tpu_custom_call.1} parent=1 // pred_fallthru
      _
    // Predicated region
    $region34: #{tpu_custom_call.1} parent=1 // pred_check
      _
    $region35: #{tpu_custom_call.1} parent=1 // pred_check_branch
      %70 = sbr.rel (0) target = $region37
    $region36: #{tpu_custom_call.1} parent=1 // pred_region
      %71 = dma.done [#allocation6], 8192
    $region37: #{tpu_custom_call.1} parent=1 // pred_fallthru
      _
    // Predicated region
    $region38: #{tpu_custom_call.1} parent=1 // pred_check
      _
    $region39: #{tpu_custom_call.1} parent=1 // pred_check_branch
      %73 = sbr.rel (0) target = $region41
    $region40: #{tpu_custom_call.1} parent=1 // pred_region
      %74 = dma.done [#allocation6], 64
    $region41: #{tpu_custom_call.1} parent=1 // pred_fallthru
      _
    // Predicated region
    $region42: #{tpu_custom_call.1} parent=1 // pred_check
      _
    $region43: #{tpu_custom_call.1} parent=1 // pred_check_branch
      %76 = sbr.rel (0) target = $region45
    $region44: #{tpu_custom_call.1} parent=1 // pred_region
      %77 = dma.done [#allocation9], 4096
    $region45: #{tpu_custom_call.1} parent=1 // pred_fallthru
      _
    %v79 = vld [vmem:[#allocation2] sm:$0xff]
    %v80 = vld [vmem:[#allocation5] sm:$0xff]
    %v81 = vld [vmem:[#allocation5 + $0x8] sm:$0xff]
    %v82 = vld [vmem:[#allocation5 + $0x10] sm:$0xff]
    %v83 = vld [vmem:[#allocation5 + $0x18] sm:$0xff]
    %v84 = vld [vmem:[#allocation5 + $0x20] sm:$0xff]
    %v85 = vld [vmem:[#allocation5 + $0x28] sm:$0xff]
    %v86 = vld [vmem:[#allocation5 + $0x30] sm:$0xff]
    %v87 = vld [vmem:[#allocation5 + $0x38] sm:$0xff]
    %v88 = vld [vmem:[#allocation5 + $0x40] sm:$0xff]
    %v89 = vld [vmem:[#allocation5 + $0x48] sm:$0xff]
    %v90 = vld [vmem:[#allocation5 + $0x50] sm:$0xff]
    %v91 = vld [vmem:[#allocation5 + $0x58] sm:$0xff]
    %v92 = vld [vmem:[#allocation5 + $0x60] sm:$0xff]
    %v93 = vld [vmem:[#allocation5 + $0x68] sm:$0xff]
    %v94 = vld [vmem:[#allocation5 + $0x70] sm:$0xff]
    %v95 = vld [vmem:[#allocation5 + $0x78] sm:$0xff]
    %v96 = vld [vmem:[#allocation5 + $0x80] sm:$0xff]
    %v97 = vld [vmem:[#allocation5 + $0x88] sm:$0xff]
    %v98 = vld [vmem:[#allocation5 + $0x90] sm:$0xff]
    %v99 = vld [vmem:[#allocation5 + $0x98] sm:$0xff]
    %v100 = vld [vmem:[#allocation5 + $0xa0] sm:$0xff]
    %v101 = vld [vmem:[#allocation5 + $0xa8] sm:$0xff]
    %v102 = vld [vmem:[#allocation5 + $0xb0] sm:$0xff]
    %v103 = vld [vmem:[#allocation5 + $0xb8] sm:$0xff]
    %v104 = vld [vmem:[#allocation5 + $0xc0] sm:$0xff]
    %v105 = vld [vmem:[#allocation5 + $0xc8] sm:$0xff]
    %v106 = vld [vmem:[#allocation5 + $0xd0] sm:$0xff]
    %v107 = vld [vmem:[#allocation5 + $0xd8] sm:$0xff]
    %v108 = vld [vmem:[#allocation5 + $0xe0] sm:$0xff]
    %v109 = vld [vmem:[#allocation5 + $0xe8] sm:$0xff]
    %v110 = vld [vmem:[#allocation5 + $0xf0] sm:$0xff]
    %v111 = vld [vmem:[#allocation5 + $0xf8] sm:$0xff]
    %v112 = vld [vmem:[#allocation5 + $0x100] sm:$0xff]
    %v113 = vld [vmem:[#allocation5 + $0x108] sm:$0xff]
    %v114 = vld [vmem:[#allocation5 + $0x110] sm:$0xff]
    %v115 = vld [vmem:[#allocation5 + $0x118] sm:$0xff]
    %v116 = vld [vmem:[#allocation5 + $0x120] sm:$0xff]
    %v117 = vld [vmem:[#allocation5 + $0x128] sm:$0xff]
    %v118 = vld [vmem:[#allocation5 + $0x130] sm:$0xff]
    %v119 = vld [vmem:[#allocation5 + $0x138] sm:$0xff]
    %v120 = vld [vmem:[#allocation5 + $0x140] sm:$0xff]
    %v121 = vld [vmem:[#allocation5 + $0x148] sm:$0xff]
    %v122 = vld [vmem:[#allocation5 + $0x150] sm:$0xff]
    %v123 = vld [vmem:[#allocation5 + $0x158] sm:$0xff]
    %v124 = vld [vmem:[#allocation5 + $0x160] sm:$0xff]
    %v125 = vld [vmem:[#allocation5 + $0x168] sm:$0xff]
    %v126 = vld [vmem:[#allocation5 + $0x170] sm:$0xff]
    %v127 = vld [vmem:[#allocation5 + $0x178] sm:$0xff]
    %v128 = vld [vmem:[#allocation5 + $0x180] sm:$0xff]
    %v129 = vld [vmem:[#allocation5 + $0x188] sm:$0xff]
    %v130 = vld [vmem:[#allocation5 + $0x190] sm:$0xff]
    %v131 = vld [vmem:[#allocation5 + $0x198] sm:$0xff]
    %v132 = vld [vmem:[#allocation5 + $0x1a0] sm:$0xff]
    %v133 = vld [vmem:[#allocation5 + $0x1a8] sm:$0xff]
    %v134 = vld [vmem:[#allocation5 + $0x1b0] sm:$0xff]
    %v135 = vld [vmem:[#allocation5 + $0x1b8] sm:$0xff]
    %v136 = vld [vmem:[#allocation5 + $0x1c0] sm:$0xff]
    %v137 = vld [vmem:[#allocation5 + $0x1c8] sm:$0xff]
    %v138 = vld [vmem:[#allocation5 + $0x1d0] sm:$0xff]
    %v139 = vld [vmem:[#allocation5 + $0x1d8] sm:$0xff]
    %v140 = vld [vmem:[#allocation5 + $0x1e0] sm:$0xff]
    %v141 = vld [vmem:[#allocation5 + $0x1e8] sm:$0xff]
    %v142 = vld [vmem:[#allocation5 + $0x1f0] sm:$0xff]
    %v143 = vld [vmem:[#allocation5 + $0x1f8] sm:$0xff]
    %v144 = vld [vmem:[#allocation7] sm:$0xf]
    %v146 = vlaneseq
    %v147 = vshrl.u32 %v146, 7
    %v148 = vsub.s32 0, %v147
    %v149 = vrot.slane %v144, %v148
    %v150 = vlaneseq
    %v151 = vshrl.u32 %v150, 7
    %v152 = vsub.s32 1, %v151
    %v153 = vrot.slane %v144, %v152
    %v154 = vlaneseq
    %v155 = vshrl.u32 %v154, 7
    %v156 = vsub.s32 2, %v155
    %v157 = vrot.slane %v144, %v156
    %v158 = vlaneseq
    %v159 = vshrl.u32 %v158, 7
    %v160 = vsub.s32 3, %v159
    %v161 = vrot.slane %v144, %v160
    %v167 = vunpack.c.l.b16 %v79
    %v168 = vunpack.c.h.b16 %v79
    %v169 = vpack.c.b16 %v167, %v167
    %v170 = vpack.c.b16 %v168, %v168
    %v237 = vunpack.c.l.b16 %v80
    %v238 = vunpack.c.h.b16 %v80
    %v239 = vunpack.c.l.b16 %v81
    %v240 = vunpack.c.h.b16 %v81
    %v241 = vunpack.c.l.b16 %v82
    %v242 = vunpack.c.h.b16 %v82
    %v243 = vunpack.c.l.b16 %v83
    %v244 = vunpack.c.h.b16 %v83
    %v245 = vunpack.c.l.b16 %v84
    %v246 = vunpack.c.h.b16 %v84
    %v247 = vunpack.c.l.b16 %v85
    %v248 = vunpack.c.h.b16 %v85
    %v249 = vunpack.c.l.b16 %v86
    %v250 = vunpack.c.h.b16 %v86
    %v251 = vunpack.c.l.b16 %v87
    %v252 = vunpack.c.h.b16 %v87
    %v253 = vunpack.c.l.b16 %v88
    %v254 = vunpack.c.h.b16 %v88
    %v255 = vunpack.c.l.b16 %v89
    %v256 = vunpack.c.h.b16 %v89
    %v257 = vunpack.c.l.b16 %v90
    %v258 = vunpack.c.h.b16 %v90
    %v259 = vunpack.c.l.b16 %v91
    %v260 = vunpack.c.h.b16 %v91
    %v261 = vunpack.c.l.b16 %v92
    %v262 = vunpack.c.h.b16 %v92
    %v263 = vunpack.c.l.b16 %v93
    %v264 = vunpack.c.h.b16 %v93
    %v265 = vunpack.c.l.b16 %v94
    %v266 = vunpack.c.h.b16 %v94
    %v267 = vunpack.c.l.b16 %v95
    %v268 = vunpack.c.h.b16 %v95
    %v269 = vunpack.c.l.b16 %v96
    %v270 = vunpack.c.h.b16 %v96
    %v271 = vunpack.c.l.b16 %v97
    %v272 = vunpack.c.h.b16 %v97
    %v273 = vunpack.c.l.b16 %v98
    %v274 = vunpack.c.h.b16 %v98
    %v275 = vunpack.c.l.b16 %v99
    %v276 = vunpack.c.h.b16 %v99
    %v277 = vunpack.c.l.b16 %v100
    %v278 = vunpack.c.h.b16 %v100
    %v279 = vunpack.c.l.b16 %v101
    %v280 = vunpack.c.h.b16 %v101
    %v281 = vunpack.c.l.b16 %v102
    %v282 = vunpack.c.h.b16 %v102
    %v283 = vunpack.c.l.b16 %v103
    %v284 = vunpack.c.h.b16 %v103
    %v285 = vunpack.c.l.b16 %v104
    %v286 = vunpack.c.h.b16 %v104
    %v287 = vunpack.c.l.b16 %v105
    %v288 = vunpack.c.h.b16 %v105
    %v289 = vunpack.c.l.b16 %v106
    %v290 = vunpack.c.h.b16 %v106
    %v291 = vunpack.c.l.b16 %v107
    %v292 = vunpack.c.h.b16 %v107
    %v293 = vunpack.c.l.b16 %v108
    %v294 = vunpack.c.h.b16 %v108
    %v295 = vunpack.c.l.b16 %v109
    %v296 = vunpack.c.h.b16 %v109
    %v297 = vunpack.c.l.b16 %v110
    %v298 = vunpack.c.h.b16 %v110
    %v299 = vunpack.c.l.b16 %v111
    %v300 = vunpack.c.h.b16 %v111
    %v301 = vunpack.c.l.b16 %v112
    %v302 = vunpack.c.h.b16 %v112
    %v303 = vunpack.c.l.b16 %v113
    %v304 = vunpack.c.h.b16 %v113
    %v305 = vunpack.c.l.b16 %v114
    %v306 = vunpack.c.h.b16 %v114
    %v307 = vunpack.c.l.b16 %v115
    %v308 = vunpack.c.h.b16 %v115
    %v309 = vunpack.c.l.b16 %v116
    %v310 = vunpack.c.h.b16 %v116
    %v311 = vunpack.c.l.b16 %v117
    %v312 = vunpack.c.h.b16 %v117
    %v313 = vunpack.c.l.b16 %v118
    %v314 = vunpack.c.h.b16 %v118
    %v315 = vunpack.c.l.b16 %v119
    %v316 = vunpack.c.h.b16 %v119
    %v317 = vunpack.c.l.b16 %v120
    %v318 = vunpack.c.h.b16 %v120
    %v319 = vunpack.c.l.b16 %v121
    %v320 = vunpack.c.h.b16 %v121
    %v321 = vunpack.c.l.b16 %v122
    %v322 = vunpack.c.h.b16 %v122
    %v323 = vunpack.c.l.b16 %v123
    %v324 = vunpack.c.h.b16 %v123
    %v325 = vunpack.c.l.b16 %v124
    %v326 = vunpack.c.h.b16 %v124
    %v327 = vunpack.c.l.b16 %v125
    %v328 = vunpack.c.h.b16 %v125
    %v329 = vunpack.c.l.b16 %v126
    %v330 = vunpack.c.h.b16 %v126
    %v331 = vunpack.c.l.b16 %v127
    %v332 = vunpack.c.h.b16 %v127
    %v333 = vunpack.c.l.b16 %v128
    %v334 = vunpack.c.h.b16 %v128
    %v335 = vunpack.c.l.b16 %v129
    %v336 = vunpack.c.h.b16 %v129
    %v337 = vunpack.c.l.b16 %v130
    %v338 = vunpack.c.h.b16 %v130
    %v339 = vunpack.c.l.b16 %v131
    %v340 = vunpack.c.h.b16 %v131
    %v341 = vunpack.c.l.b16 %v132
    %v342 = vunpack.c.h.b16 %v132
    %v343 = vunpack.c.l.b16 %v133
    %v344 = vunpack.c.h.b16 %v133
    %v345 = vunpack.c.l.b16 %v134
    %v346 = vunpack.c.h.b16 %v134
    %v347 = vunpack.c.l.b16 %v135
    %v348 = vunpack.c.h.b16 %v135
    %v349 = vunpack.c.l.b16 %v136
    %v350 = vunpack.c.h.b16 %v136
    %v351 = vunpack.c.l.b16 %v137
    %v352 = vunpack.c.h.b16 %v137
    %v353 = vunpack.c.l.b16 %v138
    %v354 = vunpack.c.h.b16 %v138
    %v355 = vunpack.c.l.b16 %v139
    %v356 = vunpack.c.h.b16 %v139
    %v357 = vunpack.c.l.b16 %v140
    %v358 = vunpack.c.h.b16 %v140
    %v359 = vunpack.c.l.b16 %v141
    %v360 = vunpack.c.h.b16 %v141
    %v361 = vunpack.c.l.b16 %v142
    %v362 = vunpack.c.h.b16 %v142
    %v363 = vunpack.c.l.b16 %v143
    %v364 = vunpack.c.h.b16 %v143
    %v365 = vpack.c.b16 %v241, %v237
    %v366 = vpack.c.b16 %v242, %v238
    %v367 = vpack.c.b16 %v243, %v239
    %v368 = vpack.c.b16 %v244, %v240
    %v369 = vpack.c.b16 %v249, %v245
    %v370 = vpack.c.b16 %v250, %v246
    %v371 = vpack.c.b16 %v251, %v247
    %v372 = vpack.c.b16 %v252, %v248
    %v373 = vpack.c.b16 %v257, %v253
    %v374 = vpack.c.b16 %v258, %v254
    %v375 = vpack.c.b16 %v259, %v255
    %v376 = vpack.c.b16 %v260, %v256
    %v377 = vpack.c.b16 %v265, %v261
    %v378 = vpack.c.b16 %v266, %v262
    %v379 = vpack.c.b16 %v267, %v263
    %v380 = vpack.c.b16 %v268, %v264
    %v381 = vpack.c.b16 %v273, %v269
    %v382 = vpack.c.b16 %v274, %v270
    %v383 = vpack.c.b16 %v275, %v271
    %v384 = vpack.c.b16 %v276, %v272
    %v385 = vpack.c.b16 %v281, %v277
    %v386 = vpack.c.b16 %v282, %v278
    %v387 = vpack.c.b16 %v283, %v279
    %v388 = vpack.c.b16 %v284, %v280
    %v389 = vpack.c.b16 %v289, %v285
    %v390 = vpack.c.b16 %v290, %v286
    %v391 = vpack.c.b16 %v291, %v287
    %v392 = vpack.c.b16 %v292, %v288
    %v393 = vpack.c.b16 %v297, %v293
    %v394 = vpack.c.b16 %v298, %v294
    %v395 = vpack.c.b16 %v299, %v295
    %v396 = vpack.c.b16 %v300, %v296
    %v397 = vpack.c.b16 %v305, %v301
    %v398 = vpack.c.b16 %v306, %v302
    %v399 = vpack.c.b16 %v307, %v303
    %v400 = vpack.c.b16 %v308, %v304
    %v401 = vpack.c.b16 %v313, %v309
    %v402 = vpack.c.b16 %v314, %v310
    %v403 = vpack.c.b16 %v315, %v311
    %v404 = vpack.c.b16 %v316, %v312
    %v405 = vpack.c.b16 %v321, %v317
    %v406 = vpack.c.b16 %v322, %v318
    %v407 = vpack.c.b16 %v323, %v319
    %v408 = vpack.c.b16 %v324, %v320
    %v409 = vpack.c.b16 %v329, %v325
    %v410 = vpack.c.b16 %v330, %v326
    %v411 = vpack.c.b16 %v331, %v327
    %v412 = vpack.c.b16 %v332, %v328
    %v413 = vpack.c.b16 %v337, %v333
    %v414 = vpack.c.b16 %v338, %v334
    %v415 = vpack.c.b16 %v339, %v335
    %v416 = vpack.c.b16 %v340, %v336
    %v417 = vpack.c.b16 %v345, %v341
    %v418 = vpack.c.b16 %v346, %v342
    %v419 = vpack.c.b16 %v347, %v343
    %v420 = vpack.c.b16 %v348, %v344
    %v421 = vpack.c.b16 %v353, %v349
    %v422 = vpack.c.b16 %v354, %v350
    %v423 = vpack.c.b16 %v355, %v351
    %v424 = vpack.c.b16 %v356, %v352
    %v425 = vpack.c.b16 %v361, %v357
    %v426 = vpack.c.b16 %v362, %v358
    %v427 = vpack.c.b16 %v363, %v359
    %v428 = vpack.c.b16 %v364, %v360
    %493 = vmatprep.subr.bf16.mxu0 %v394
    %494 = vmatpush1.bf16.msra.mxu0 %v393
    %495 = vmatprep.subr.bf16.mxu0 %v390
    %496 = vmatpush1.bf16.msra.mxu0 %v389
    %497 = vmatprep.subr.bf16.mxu0 %v386
    %498 = vmatpush1.bf16.msra.mxu0 %v385
    %499 = vmatprep.subr.bf16.mxu0 %v382
    %500 = vmatpush1.bf16.msra.mxu0 %v381
    %501 = vmatprep.subr.bf16.mxu0 %v378
    %502 = vmatpush1.bf16.msra.mxu0 %v377
    %503 = vmatprep.subr.bf16.mxu0 %v374
    %504 = vmatpush1.bf16.msra.mxu0 %v373
    %505 = vmatprep.subr.bf16.mxu0 %v370
    %506 = vmatpush1.bf16.msra.mxu0 %v369
    %507 = vmatprep.subr.bf16.mxu0 %v366
    %508 = vmatpush1.bf16.msra.mxu0 %v365
    %509 = vmatprep.subr.bf16.mxu0 %v426
    %510 = vmatpush2.bf16.msra.mxu0 %v425
    %511 = vmatprep.subr.bf16.mxu0 %v422
    %512 = vmatpush2.bf16.msra.mxu0 %v421
    %513 = vmatprep.subr.bf16.mxu0 %v418
    %514 = vmatpush2.bf16.msra.mxu0 %v417
    %515 = vmatprep.subr.bf16.mxu0 %v414
    %516 = vmatpush2.bf16.msra.mxu0 %v413
    %517 = vmatprep.subr.bf16.mxu0 %v410
    %518 = vmatpush2.bf16.msra.mxu0 %v409
    %519 = vmatprep.subr.bf16.mxu0 %v406
    %520 = vmatpush2.bf16.msra.mxu0 %v405
    %521 = vmatprep.subr.bf16.mxu0 %v402
    %522 = vmatpush2.bf16.msra.mxu0 %v401
    %523 = vmatprep.subr.bf16.mxu0 %v398
    %524 = vmatpush2.bf16.msra.mxu0 %v397
    %525 = vmatprep.mubr.bf16.mxu0 %v170
    %526 = vmatmul.mubr.bf16.gmra.mxu0 %v169
    %v527 = vpop.f32.mrf.mxu0
    %v528 = vadd.f32 %v149, %v527
    %v529 = vpop.f32.mrf.mxu0
    %v530 = vadd.f32 %v153, %v529
    %v531 = vpop.f32.mrf.mxu0
    %v532 = vpop.f32.mrf.mxu0
    %533 = vdwg.mxu0
    %534 = vmatprep.subr.bf16.mxu0 %v396
    %535 = vmatpush1.bf16.msra.mxu0 %v395
    %536 = vmatprep.subr.bf16.mxu0 %v392
    %537 = vmatpush1.bf16.msra.mxu0 %v391
    %538 = vmatprep.subr.bf16.mxu0 %v388
    %539 = vmatpush1.bf16.msra.mxu0 %v387
    %540 = vmatprep.subr.bf16.mxu0 %v384
    %541 = vmatpush1.bf16.msra.mxu0 %v383
    %542 = vmatprep.subr.bf16.mxu0 %v380
    %543 = vmatpush1.bf16.msra.mxu0 %v379
    %544 = vmatprep.subr.bf16.mxu0 %v376
    %545 = vmatpush1.bf16.msra.mxu0 %v375
    %546 = vmatprep.subr.bf16.mxu0 %v372
    %547 = vmatpush1.bf16.msra.mxu0 %v371
    %548 = vmatprep.subr.bf16.mxu0 %v368
    %549 = vmatpush1.bf16.msra.mxu0 %v367
    %550 = vmatprep.subr.bf16.mxu0 %v428
    %551 = vmatpush2.bf16.msra.mxu0 %v427
    %552 = vmatprep.subr.bf16.mxu0 %v424
    %553 = vmatpush2.bf16.msra.mxu0 %v423
    %554 = vmatprep.subr.bf16.mxu0 %v420
    %555 = vmatpush2.bf16.msra.mxu0 %v419
    %556 = vmatprep.subr.bf16.mxu0 %v416
    %557 = vmatpush2.bf16.msra.mxu0 %v415
    %558 = vmatprep.subr.bf16.mxu0 %v412
    %559 = vmatpush2.bf16.msra.mxu0 %v411
    %560 = vmatprep.subr.bf16.mxu0 %v408
    %561 = vmatpush2.bf16.msra.mxu0 %v407
    %562 = vmatprep.subr.bf16.mxu0 %v404
    %563 = vmatpush2.bf16.msra.mxu0 %v403
    %564 = vmatprep.subr.bf16.mxu0 %v400
    %565 = vmatpush2.bf16.msra.mxu0 %v399
    %566 = vmatprep.mubr.bf16.mxu0 %v170
    %567 = vmatmul.mubr.bf16.gmra.mxu0 %v169
    %v568 = vpop.f32.mrf.mxu0
    %v569 = vadd.f32 %v157, %v568
    %v570 = vpop.f32.mrf.mxu0
    %v571 = vadd.f32 %v161, %v570
    %v572 = vpop.f32.mrf.mxu0
    %v573 = vpop.f32.mrf.mxu0
    %574 = vdwg.mxu0
    %v575 = vtanh.pop %v528
    %v576 = vtanh.pop %v530
    %v577 = vtanh.pop %v569
    %v578 = vtanh.pop %v571
    %v579 = vpack.c.bf16 %v575, %v575
    %v580 = vpack.c.bf16 %v576, %v576
    %v581 = vpack.c.bf16 %v577, %v577
    %v582 = vpack.c.bf16 %v578, %v578
    %v583 = vld [vmem:[#allocation8] sm:$0xf]
    %v584 = vld [vmem:[#allocation8 + $0x4] sm:$0xf]
    %v585 = vld [vmem:[#allocation8 + $0x8] sm:$0xf]
    %v586 = vld [vmem:[#allocation8 + $0xc] sm:$0xf]
    %v587 = vld [vmem:[#allocation8 + $0x10] sm:$0xf]
    %v588 = vld [vmem:[#allocation8 + $0x14] sm:$0xf]
    %v589 = vld [vmem:[#allocation8 + $0x18] sm:$0xf]
    %v590 = vld [vmem:[#allocation8 + $0x1c] sm:$0xf]
    %v591 = vld [vmem:[#allocation8 + $0x20] sm:$0xf]
    %v592 = vld [vmem:[#allocation8 + $0x24] sm:$0xf]
    %v593 = vld [vmem:[#allocation8 + $0x28] sm:$0xf]
    %v594 = vld [vmem:[#allocation8 + $0x2c] sm:$0xf]
    %v595 = vld [vmem:[#allocation8 + $0x30] sm:$0xf]
    %v596 = vld [vmem:[#allocation8 + $0x34] sm:$0xf]
    %v597 = vld [vmem:[#allocation8 + $0x38] sm:$0xf]
    %v598 = vld [vmem:[#allocation8 + $0x3c] sm:$0xf]
    %v599 = vld [vmem:[#allocation8 + $0x40] sm:$0xf]
    %v600 = vld [vmem:[#allocation8 + $0x44] sm:$0xf]
    %v601 = vld [vmem:[#allocation8 + $0x48] sm:$0xf]
    %v602 = vld [vmem:[#allocation8 + $0x4c] sm:$0xf]
    %v603 = vld [vmem:[#allocation8 + $0x50] sm:$0xf]
    %v604 = vld [vmem:[#allocation8 + $0x54] sm:$0xf]
    %v605 = vld [vmem:[#allocation8 + $0x58] sm:$0xf]
    %v606 = vld [vmem:[#allocation8 + $0x5c] sm:$0xf]
    %v607 = vld [vmem:[#allocation8 + $0x60] sm:$0xf]
    %v608 = vld [vmem:[#allocation8 + $0x64] sm:$0xf]
    %v609 = vld [vmem:[#allocation8 + $0x68] sm:$0xf]
    %v610 = vld [vmem:[#allocation8 + $0x6c] sm:$0xf]
    %v611 = vld [vmem:[#allocation8 + $0x70] sm:$0xf]
    %v612 = vld [vmem:[#allocation8 + $0x74] sm:$0xf]
    %v613 = vld [vmem:[#allocation8 + $0x78] sm:$0xf]
    %v614 = vld [vmem:[#allocation8 + $0x7c] sm:$0xf]
    %v615 = vld [vmem:[#allocation8 + $0x80] sm:$0xf]
    %v616 = vld [vmem:[#allocation8 + $0x84] sm:$0xf]
    %v617 = vld [vmem:[#allocation8 + $0x88] sm:$0xf]
    %v618 = vld [vmem:[#allocation8 + $0x8c] sm:$0xf]
    %v619 = vld [vmem:[#allocation8 + $0x90] sm:$0xf]
    %v620 = vld [vmem:[#allocation8 + $0x94] sm:$0xf]
    %v621 = vld [vmem:[#allocation8 + $0x98] sm:$0xf]
    %v622 = vld [vmem:[#allocation8 + $0x9c] sm:$0xf]
    %v623 = vld [vmem:[#allocation8 + $0xa0] sm:$0xf]
    %v624 = vld [vmem:[#allocation8 + $0xa4] sm:$0xf]
    %v625 = vld [vmem:[#allocation8 + $0xa8] sm:$0xf]
    %v626 = vld [vmem:[#allocation8 + $0xac] sm:$0xf]
    %v627 = vld [vmem:[#allocation8 + $0xb0] sm:$0xf]
    %v628 = vld [vmem:[#allocation8 + $0xb4] sm:$0xf]
    %v629 = vld [vmem:[#allocation8 + $0xb8] sm:$0xf]
    %v630 = vld [vmem:[#allocation8 + $0xbc] sm:$0xf]
    %v631 = vld [vmem:[#allocation8 + $0xc0] sm:$0xf]
    %v632 = vld [vmem:[#allocation8 + $0xc4] sm:$0xf]
    %v633 = vld [vmem:[#allocation8 + $0xc8] sm:$0xf]
    %v634 = vld [vmem:[#allocation8 + $0xcc] sm:$0xf]
    %v635 = vld [vmem:[#allocation8 + $0xd0] sm:$0xf]
    %v636 = vld [vmem:[#allocation8 + $0xd4] sm:$0xf]
    %v637 = vld [vmem:[#allocation8 + $0xd8] sm:$0xf]
    %v638 = vld [vmem:[#allocation8 + $0xdc] sm:$0xf]
    %v639 = vld [vmem:[#allocation8 + $0xe0] sm:$0xf]
    %v640 = vld [vmem:[#allocation8 + $0xe4] sm:$0xf]
    %v641 = vld [vmem:[#allocation8 + $0xe8] sm:$0xf]
    %v642 = vld [vmem:[#allocation8 + $0xec] sm:$0xf]
    %v643 = vld [vmem:[#allocation8 + $0xf0] sm:$0xf]
    %v644 = vld [vmem:[#allocation8 + $0xf4] sm:$0xf]
    %v645 = vld [vmem:[#allocation8 + $0xf8] sm:$0xf]
    %v646 = vld [vmem:[#allocation8 + $0xfc] sm:$0xf]
    %v647 = vld [vmem:[%s4] sm:$0x1]
    %v649 = vlaneseq
    %v650 = vshrl.u32 %v649, 7
    %v651 = vsub.s32 0, %v650
    %v652 = vrot.slane %v647, %v651
    %v718 = vunpack.c.l.b16 %v583
    %v719 = vunpack.c.l.b16 %v584
    %v720 = vunpack.c.l.b16 %v585
    %v721 = vunpack.c.l.b16 %v586
    %v722 = vunpack.c.l.b16 %v587
    %v723 = vunpack.c.l.b16 %v588
    %v724 = vunpack.c.l.b16 %v589
    %v725 = vunpack.c.l.b16 %v590
    %v726 = vunpack.c.l.b16 %v591
    %v727 = vunpack.c.l.b16 %v592
    %v728 = vunpack.c.l.b16 %v593
    %v729 = vunpack.c.l.b16 %v594
    %v730 = vunpack.c.l.b16 %v595
    %v731 = vunpack.c.l.b16 %v596
    %v732 = vunpack.c.l.b16 %v597
    %v733 = vunpack.c.l.b16 %v598
    %v734 = vunpack.c.l.b16 %v599
    %v735 = vunpack.c.l.b16 %v600
    %v736 = vunpack.c.l.b16 %v601
    %v737 = vunpack.c.l.b16 %v602
    %v738 = vunpack.c.l.b16 %v603
    %v739 = vunpack.c.l.b16 %v604
    %v740 = vunpack.c.l.b16 %v605
    %v741 = vunpack.c.l.b16 %v606
    %v742 = vunpack.c.l.b16 %v607
    %v743 = vunpack.c.l.b16 %v608
    %v744 = vunpack.c.l.b16 %v609
    %v745 = vunpack.c.l.b16 %v610
    %v746 = vunpack.c.l.b16 %v611
    %v747 = vunpack.c.l.b16 %v612
    %v748 = vunpack.c.l.b16 %v613
    %v749 = vunpack.c.l.b16 %v614
    %v750 = vunpack.c.l.b16 %v615
    %v751 = vunpack.c.l.b16 %v616
    %v752 = vunpack.c.l.b16 %v617
    %v753 = vunpack.c.l.b16 %v618
    %v754 = vunpack.c.l.b16 %v619
    %v755 = vunpack.c.l.b16 %v620
    %v756 = vunpack.c.l.b16 %v621
    %v757 = vunpack.c.l.b16 %v622
    %v758 = vunpack.c.l.b16 %v623
    %v759 = vunpack.c.l.b16 %v624
    %v760 = vunpack.c.l.b16 %v625
    %v761 = vunpack.c.l.b16 %v626
    %v762 = vunpack.c.l.b16 %v627
    %v763 = vunpack.c.l.b16 %v628
    %v764 = vunpack.c.l.b16 %v629
    %v765 = vunpack.c.l.b16 %v630
    %v766 = vunpack.c.l.b16 %v631
    %v767 = vunpack.c.l.b16 %v632
    %v768 = vunpack.c.l.b16 %v633
    %v769 = vunpack.c.l.b16 %v634
    %v770 = vunpack.c.l.b16 %v635
    %v771 = vunpack.c.l.b16 %v636
    %v772 = vunpack.c.l.b16 %v637
    %v773 = vunpack.c.l.b16 %v638
    %v774 = vunpack.c.l.b16 %v639
    %v775 = vunpack.c.l.b16 %v640
    %v776 = vunpack.c.l.b16 %v641
    %v777 = vunpack.c.l.b16 %v642
    %v778 = vunpack.c.l.b16 %v643
    %v779 = vunpack.c.l.b16 %v644
    %v780 = vunpack.c.l.b16 %v645
    %v781 = vunpack.c.l.b16 %v646
    %v782 = vpack.c.b16 %v719, %v718
    %v783 = vpack.c.b16 %v721, %v720
    %v784 = vpack.c.b16 %v723, %v722
    %v785 = vpack.c.b16 %v725, %v724
    %v786 = vpack.c.b16 %v727, %v726
    %v787 = vpack.c.b16 %v729, %v728
    %v788 = vpack.c.b16 %v731, %v730
    %v789 = vpack.c.b16 %v733, %v732
    %v790 = vpack.c.b16 %v735, %v734
    %v791 = vpack.c.b16 %v737, %v736
    %v792 = vpack.c.b16 %v739, %v738
    %v793 = vpack.c.b16 %v741, %v740
    %v794 = vpack.c.b16 %v743, %v742
    %v795 = vpack.c.b16 %v745, %v744
    %v796 = vpack.c.b16 %v747, %v746
    %v797 = vpack.c.b16 %v749, %v748
    %v798 = vpack.c.b16 %v751, %v750
    %v799 = vpack.c.b16 %v753, %v752
    %v800 = vpack.c.b16 %v755, %v754
    %v801 = vpack.c.b16 %v757, %v756
    %v802 = vpack.c.b16 %v759, %v758
    %v803 = vpack.c.b16 %v761, %v760
    %v804 = vpack.c.b16 %v763, %v762
    %v805 = vpack.c.b16 %v765, %v764
    %v806 = vpack.c.b16 %v767, %v766
    %v807 = vpack.c.b16 %v769, %v768
    %v808 = vpack.c.b16 %v771, %v770
    %v809 = vpack.c.b16 %v773, %v772
    %v810 = vpack.c.b16 %v775, %v774
    %v811 = vpack.c.b16 %v777, %v776
    %v812 = vpack.c.b16 %v779, %v778
    %v813 = vpack.c.b16 %v781, %v780
    %846 = vmatprep.subr.bf16.mxu0 0
    %847 = vmatpush1.bf16.msra.mxu0 %v789
    %848 = vmatprep.subr.bf16.mxu0 0
    %849 = vmatpush1.bf16.msra.mxu0 %v788
    %850 = vmatprep.subr.bf16.mxu0 0
    %851 = vmatpush1.bf16.msra.mxu0 %v787
    %852 = vmatprep.subr.bf16.mxu0 0
    %853 = vmatpush1.bf16.msra.mxu0 %v786
    %854 = vmatprep.subr.bf16.mxu0 0
    %855 = vmatpush1.bf16.msra.mxu0 %v785
    %856 = vmatprep.subr.bf16.mxu0 0
    %857 = vmatpush1.bf16.msra.mxu0 %v784
    %858 = vmatprep.subr.bf16.mxu0 0
    %859 = vmatpush1.bf16.msra.mxu0 %v783
    %860 = vmatprep.subr.bf16.mxu0 0
    %861 = vmatpush1.bf16.msra.mxu0 %v782
    %862 = vmatprep.subr.bf16.mxu0 0
    %863 = vmatpush2.bf16.msra.mxu0 %v797
    %864 = vmatprep.subr.bf16.mxu0 0
    %865 = vmatpush2.bf16.msra.mxu0 %v796
    %866 = vmatprep.subr.bf16.mxu0 0
    %867 = vmatpush2.bf16.msra.mxu0 %v795
    %868 = vmatprep.subr.bf16.mxu0 0
    %869 = vmatpush2.bf16.msra.mxu0 %v794
    %870 = vmatprep.subr.bf16.mxu0 0
    %871 = vmatpush2.bf16.msra.mxu0 %v793
    %872 = vmatprep.subr.bf16.mxu0 0
    %873 = vmatpush2.bf16.msra.mxu0 %v792
    %874 = vmatprep.subr.bf16.mxu0 0
    %875 = vmatpush2.bf16.msra.mxu0 %v791
    %876 = vmatprep.subr.bf16.mxu0 0
    %877 = vmatpush2.bf16.msra.mxu0 %v790
    %878 = vmatprep.mubr.bf16.mxu0 %v580
    %879 = vmatmul.mubr.bf16.gmra.mxu0 %v579
    %v880 = vpop.f32.mrf.mxu0
    %v881 = vadd.f32 %v652, %v880
    %v882 = vpop.f32.mrf.mxu0
    %v883 = vpop.f32.mrf.mxu0
    %v884 = vpop.f32.mrf.mxu0
    %885 = vdwg.mxu0
    %886 = vmatprep.subr.bf16.mxu0 0
    %887 = vmatpush1.bf16.msra.mxu0 %v805
    %888 = vmatprep.subr.bf16.mxu0 0
    %889 = vmatpush1.bf16.msra.mxu0 %v804
    %890 = vmatprep.subr.bf16.mxu0 0
    %891 = vmatpush1.bf16.msra.mxu0 %v803
    %892 = vmatprep.subr.bf16.mxu0 0
    %893 = vmatpush1.bf16.msra.mxu0 %v802
    %894 = vmatprep.subr.bf16.mxu0 0
    %895 = vmatpush1.bf16.msra.mxu0 %v801
    %896 = vmatprep.subr.bf16.mxu0 0
    %897 = vmatpush1.bf16.msra.mxu0 %v800
    %898 = vmatprep.subr.bf16.mxu0 0
    %899 = vmatpush1.bf16.msra.mxu0 %v799
    %900 = vmatprep.subr.bf16.mxu0 0
    %901 = vmatpush1.bf16.msra.mxu0 %v798
    %902 = vmatprep.subr.bf16.mxu0 0
    %903 = vmatpush2.bf16.msra.mxu0 %v813
    %904 = vmatprep.subr.bf16.mxu0 0
    %905 = vmatpush2.bf16.msra.mxu0 %v812
    %906 = vmatprep.subr.bf16.mxu0 0
    %907 = vmatpush2.bf16.msra.mxu0 %v811
    %908 = vmatprep.subr.bf16.mxu0 0
    %909 = vmatpush2.bf16.msra.mxu0 %v810
    %910 = vmatprep.subr.bf16.mxu0 0
    %911 = vmatpush2.bf16.msra.mxu0 %v809
    %912 = vmatprep.subr.bf16.mxu0 0
    %913 = vmatpush2.bf16.msra.mxu0 %v808
    %914 = vmatprep.subr.bf16.mxu0 0
    %915 = vmatpush2.bf16.msra.mxu0 %v807
    %916 = vmatprep.subr.bf16.mxu0 0
    %917 = vmatpush2.bf16.msra.mxu0 %v806
    %918 = vmatprep.mubr.bf16.mxu0 %v582
    %919 = vmatmul.mubr.bf16.gmra.mxu0 %v581
    %v920 = vpop.f32.mrf.mxu0
    %v921 = vadd.f32 %v881, %v920
    %v922 = vpop.f32.mrf.mxu0
    %v923 = vpop.f32.mrf.mxu0
    %v924 = vpop.f32.mrf.mxu0
    %925 = vdwg.mxu0
    %v926 = vmul.f32 %v575, %v575
    %v927 = vmul.f32 %v576, %v576
    %v928 = vmul.f32 %v577, %v577
    %v929 = vmul.f32 %v578, %v578
    %930 = vadd.xlane.f32.xlu0 %v926
    %v931 = vpop.xlane.xlu0 %930
    %932 = vadd.xlane.f32.xlu0 %v927
    %v933 = vpop.xlane.xlu0 %932
    %934 = vadd.xlane.f32.xlu0 %v928
    %v935 = vpop.xlane.xlu0 %934
    %936 = vadd.xlane.f32.xlu0 %v929
    %v937 = vpop.xlane.xlu0 %936
    %vm938 = vcmask 97280
    %v939 = vsel %vm938, %v931, %v933
    %vm940 = vcmask 195584
    %v941 = vsel %vm940, %v939, %v935
    %vm942 = vcmask 293888
    %v943 = vsel %vm942, %v941, %v937
    %vm944 = vcmask 392192
    %v945 = vsel %vm944, %v943, 0.0
    %v946 = vld [vmem:[%s5] sm:$0x1]
    %v948 = vlaneseq
    %v949 = vshrl.u32 %v948, 7
    %v950 = vsub.s32 0, %v949
    %v951 = vrot.slane %v946, %v950
    %954 = vrot.lane.b32.xlu0 %v921, 127
    %v955 = vpop.permute.xlu0 %954
    %957 = vrot.lane.b32.xlu0 %v951, 127
    %v958 = vpop.permute.xlu0 %957
    %vm960 = vcmp.lt.f32.partialorder %v955, %v921
    %v961 = vsel %vm960, %v958, %v951
    %v962 = vmin.f32 %v921, %v955
    %963 = vrot.lane.b32.xlu0 %v921, 126
    %v964 = vpop.permute.xlu0 %963
    %966 = vrot.lane.b32.xlu0 %v951, 126
    %v967 = vpop.permute.xlu0 %966
    %vm969 = vcmp.lt.f32.partialorder %v964, %v962
    %v970 = vsel %vm969, %v967, %v961
    %v971 = vmin.f32 %v962, %v964
    %972 = vrot.lane.b32.xlu0 %v921, 125
    %v973 = vpop.permute.xlu0 %972
    %975 = vrot.lane.b32.xlu0 %v951, 125
    %v976 = vpop.permute.xlu0 %975
    %vm978 = vcmp.lt.f32.partialorder %v973, %v971
    %v979 = vsel %vm978, %v976, %v970
    %v980 = vmin.f32 %v971, %v973
    %v981 = vadd.f32 %v980, %v945
    %v982 = vmax.f32 %v981, 0.0
    %v983 = vrsqrt.pop %v982
    %v984 = vmul.f32 %v982, %v983
    %vm985 = vcmp.eq.f32.partialorder %v982, inf
    %v986 = vsel %vm985, %v982, %v984
    %vm987 = vcmp.eq.f32.partialorder %v982, 0.0
    %v988 = vand.u32 %v982, 2147483648
    %v989 = vsel %vm987, %v988, %v986
    %v990 = vld [vmem:[%s6] sm:$0x1]
    %vm991 = vcmp.gt.f32.partialorder %v990, 0.5
    %v992 = vsel %vm991, 1, 0
    %v993 = vlaneseq
    %v994 = vshrl.u32 %v993, 7
    %v995 = vsub.s32 0, %v994
    %v996 = vrot.slane %v992, %v995
    %vm997 = vcmp.eq.s32.totalorder %v996, 1
    %v998 = vsel %vm997, inf, %v989
    %1000 = vrot.lane.b32.xlu0 %v979, 48
    %v1001 = vpop.permute.xlu0 %1000
    %1003 = vrot.lane.b32.xlu0 %v921, 48
    %v1004 = vpop.permute.xlu0 %1003
    %v1006 = vsel %vm944, %v998, %v1001
    %vm1007 = vcmask 785408
    %v1008 = vsel %vm1007, %v1006, %v1004
    %vm1009 = vcmask 916480
    %v1010 = vsel %vm1009, %v1008, 0.0
    %1011 = vst [vmem:[#allocation10] sm:$0xff] %v1010
    // Predicated region
    $region46: #{tpu_custom_call.1} parent=1 // pred_check
      _
    $region47: #{tpu_custom_call.1} parent=1 // pred_check_branch
      %1013 = sbr.rel (0) target = $region49
    $region48: #{tpu_custom_call.1} parent=1 // pred_region
      %s1015 = ssub.s32 128, 128
      %1016 = vsyncadd [#allocation4], %s1015
      %s1018 = sshll.u32 [#allocation10], 4
      %s1019 = int_to_ptr.vmem [resolvable:$true] %s1018
      %1021 = dma.vmem_to_hbm [thread:$0]  %s1019, 128, %s7, [#allocation4]
    $region49: #{tpu_custom_call.1} parent=1 // pred_fallthru
      _
    // Predicated region
    $region50: #{tpu_custom_call.1} parent=1 // pred_check
      _
    $region51: #{tpu_custom_call.1} parent=1 // pred_check_branch
      %1023 = sbr.rel (0) target = $region53
    $region52: #{tpu_custom_call.1} parent=1 // pred_region
      %1024 = dma.done [#allocation4], 128
    $region53: #{tpu_custom_call.1} parent=1 // pred_fallthru
      _
    %1025 = vsyncpa [#allocation3], 1
    %1026 = vsyncpa [#allocation6], 1
    %1027 = vsyncpa [#allocation9], 1
    %1028 = vsyncpa [#allocation4], 1

</llo_original>
